<compile_context>
chip_gen: v6e
topology: v6e:2x2x1
jax: 0.10.0
libtpu: 0.0.40
codegen_flags: <defaults>
</compile_context>

<pallas_src>
import functools

import jax
import jax.numpy as jnp
from jax.experimental import pallas as pl
from jax.experimental.pallas import tpu as pltpu


# ---------------------------------------------------------------------------
# helpers
# ---------------------------------------------------------------------------
def _round_up(n, m):
    return ((n + m - 1) // m) * m


def _cdiv(a, b):
    return -(-a // b)


def _block_spec(shape, index_map, *, single_buffer=False):
    """BlockSpec helper: request a single buffer for grid-constant blocks."""
    if single_buffer:
        try:
            return pl.BlockSpec(shape, index_map, pipeline_mode=pl.Buffered(1))
        except Exception:  # older jax without pipeline_mode / Buffered
            pass
    return pl.BlockSpec(shape, index_map)


def _padded_tile_bytes(rows, cols, itemsize):
    # VMEM tiles are laid out on an (8, 128) grid.
    return _round_up(max(rows, 1), 8) * _round_up(max(cols, 1), 128) * itemsize


def _batch_tiling(batch, block_b):
    """Balanced batch tiling: pad < 8 rows per tile; >= 2 tiles when B > 8 (v7x)."""
    nb = max(1, _cdiv(batch, block_b))
    if nb == 1 and batch > 8:
        nb = 2                      # keep both v7x TensorCores busy
    if nb == 1:
        return batch, batch, 1      # single full-dim tile, no padding
    tb = _round_up(_cdiv(batch, nb), 8)
    return tb, nb * tb, nb


def _feature_tiling(in_size, out_size, w_itemsize):
    """N / K tiles for the fused weight. Full-dim (possibly unaligned) blocks unless
    a resident weight block would strain VMEM (notably v7x: 64 MiB physical)."""
    tn = out_size
    if in_size * out_size * w_itemsize > (8 << 20):
        if out_size % 512 == 0:
            tn = 512                # multiple of 256 -> fills v6e/v7x 256x256 MXU
        elif out_size % 256 == 0:
            tn = 256
    tk = in_size
    if in_size >= 4096 and in_size % 512 == 0:
        tk = 512                    # K-tiled path with f32 accumulator
    return tn, tk


# ---------------------------------------------------------------------------
# kernels
# ---------------------------------------------------------------------------
def _fused_kernel(x_ref, w_ref, b_ref, o_ref, *, neg_slope):
    # Single fused affine: MXU in the weight dtype (bf16 by default), f32 accumulate.
    acc = jnp.dot(x_ref[...].astype(w_ref.dtype), w_ref[...],
                  preferred_element_type=jnp.float32)
    h = acc + b_ref[...]                       # bias + LeakyReLU epilogue in f32
    o_ref[...] = jnp.maximum(h, neg_slope * h).astype(o_ref.dtype)


def _fused_kernel_ktiled(x_ref, w_ref, b_ref, o_ref, acc_ref, *, neg_slope):
    @pl.when(pl.program_id(2) == 0)
    def _():
        acc_ref[...] = jnp.zeros_like(acc_ref)

    acc_ref[...] += jnp.dot(x_ref[...].astype(w_ref.dtype), w_ref[...],
                            preferred_element_type=jnp.float32)

    @pl.when(pl.program_id(2) == pl.num_programs(2) - 1)
    def _():
        h = acc_ref[...] + b_ref[...]
        o_ref[...] = jnp.maximum(h, neg_slope * h).astype(o_ref.dtype)


def _unfused_kernel(x_ref, w1_ref, b1_ref, w2_ref, b2_ref, o_ref, *, neg_slope):
    # Two in-kernel dots with the intermediate kept on-chip (no HBM round trip).
    h1 = jnp.dot(x_ref[...].astype(w1_ref.dtype), w1_ref[...],
                 preferred_element_type=jnp.float32) + b1_ref[...]
    h2 = jnp.dot(h1.astype(w2_ref.dtype), w2_ref[...],
                 preferred_element_type=jnp.float32) + b2_ref[...]
    o_ref[...] = jnp.maximum(h2, neg_slope * h2).astype(o_ref.dtype)


# ---------------------------------------------------------------------------
# wrappers
# ---------------------------------------------------------------------------
def fuse_base_emb_params(w1_t, b1, w2_t, b2, mxu_dtype=jnp.bfloat16):
    """Fold the two bias-affine layers into one:
         leaky_relu((x@W1 + b1)@W2 + b2) == leaky_relu(x @ (W1@W2) + (b1@W2 + b2))
    Call ONCE per weight update (not per forward): the fusion matmul and the bf16
    cast then cost nothing on the forward path.
    """
    w1_f = w1_t.astype(jnp.float32)
    w2_f = w2_t.astype(jnp.float32)
    w_fused = (w1_f @ w2_f).astype(mxu_dtype)                            # (in, out)
    b_fused = b1.astype(jnp.float32) @ w2_f + b2.astype(jnp.float32)     # (1, out) f32
    return w_fused, b_fused


def base_emb_forward_fused(x, w_fused, b_fused, *, block_b=512, out_dtype=None,
                           negative_slope=0.01):
    """Forward with pre-fused weights: one MXU matmul per (batch, N[, K]) tile."""
    B, in_size = x.shape
    out_size = w_fused.shape[1]
    out_dtype = jnp.dtype(out_dtype) if out_dtype is not None else x.dtype
    w_it = jnp.dtype(w_fused.dtype).itemsize
    x_it = jnp.dtype(x.dtype).itemsize
    o_it = jnp.dtype(out_dtype).itemsize

    tb, b_pad, nb = _batch_tiling(B, block_b)
    tn, tk = _feature_tiling(in_size, out_size, w_it)
    nn = out_size // tn
    nk = in_size // tk

    # Only pad (batch only) when B does not split exactly into 8-row tiles.
    x_in = x
    if b_pad != B:
        x_in = jnp.zeros((b_pad, in_size), x.dtype).at[:B].set(x)

    grid = (nb, nn, nk)
    w_const = (nn == 1 and nk == 1)
    b_const = (nn == 1)

    in_specs = [
        _block_spec((tb, tk), lambda i, j, k: (i, k)),
        _block_spec((tk, tn), lambda i, j, k: (k, j), single_buffer=w_const),
        _block_spec((1, tn), lambda i, j, k: (0, j), single_buffer=b_const),
    ]
    out_spec = pl.BlockSpec((tb, tn), lambda i, j, k: (i, j))

    vmem_bytes = (
        _padded_tile_bytes(tk, tn, w_it) * (1 if w_const else 2)
        + _padded_tile_bytes(1, tn, 4) * (1 if b_const else 2)
        + _padded_tile_bytes(tb, tk, x_it) * 2
        + _padded_tile_bytes(tb, tn, o_it) * 2
        + (_padded_tile_bytes(tb, tn, 4) if nk > 1 else 0)
    )
    vmem_limit = max(32 << 20, min(int(vmem_bytes * 1.5) + (2 << 20), 64 << 20))

    flops = 2 * b_pad * in_size * out_size
    bytes_accessed = (x_in.size * x_it + w_fused.size * w_it
                      + b_fused.size * 4 + b_pad * out_size * o_it)

    if nk == 1:
        kernel = functools.partial(_fused_kernel, neg_slope=negative_slope)
        scratch_shapes = ()
    else:
        kernel = functools.partial(_fused_kernel_ktiled, neg_slope=negative_slope)
        scratch_shapes = [pltpu.VMEM((tb, tn), jnp.float32)]

    out = pl.pallas_call(
        kernel,
        out_shape=jax.ShapeDtypeStruct((b_pad, out_size), out_dtype),
        grid=grid,
        in_specs=in_specs,
        out_specs=out_spec,
        scratch_shapes=scratch_shapes,
        compiler_params=pltpu.CompilerParams(
            dimension_semantics=("parallel", "parallel", "arbitrary"),
            vmem_limit_bytes=vmem_limit),
        cost_estimate=pl.CostEstimate(
            flops=flops, transcendentals=0, bytes_accessed=bytes_accessed),
    )(x_in, w_fused, b_fused)

    return out if b_pad == B else out[:B]


def base_emb_forward(x, w1_t, b1, w2_t, b2, *, block_b=512, out_dtype=None,
                     negative_slope=0.01):
    """Un-cached path: two in-kernel dots with an on-chip intermediate. Use when the
    weights change every call and B < in_size (per-call fusion would be a net loss);
    otherwise prefer fuse_base_emb_params + base_emb_forward_fused."""
    B, in_size = x.shape
    out_size = w1_t.shape[1]
    out_dtype = jnp.dtype(out_dtype) if out_dtype is not None else x.dtype
    x_it = jnp.dtype(x.dtype).itemsize
    o_it = jnp.dtype(out_dtype).itemsize
    w1_it = jnp.dtype(w1_t.dtype).itemsize
    w2_it = jnp.dtype(w2_t.dtype).itemsize

    tb, b_pad, nb = _batch_tiling(B, block_b)
    x_in = x
    if b_pad != B:
        x_in = jnp.zeros((b_pad, in_size), x.dtype).at[:B].set(x)

    in_specs = [
        _block_spec((tb, in_size), lambda i: (i, 0)),
        _block_spec((in_size, out_size), lambda i: (0, 0), single_buffer=True),
        _block_spec((1, out_size), lambda i: (0, 0), single_buffer=True),
        _block_spec((out_size, out_size), lambda i: (0, 0), single_buffer=True),
        _block_spec((1, out_size), lambda i: (0, 0), single_buffer=True),
    ]
    out_spec = pl.BlockSpec((tb, out_size), lambda i: (i, 0))

    vmem_bytes = (
        _padded_tile_bytes(in_size, out_size, w1_it)
        + _padded_tile_bytes(out_size, out_size, w2_it)
        + 2 * _padded_tile_bytes(1, out_size, 4)
        + _padded_tile_bytes(tb, in_size, x_it) * 2
        + _padded_tile_bytes(tb, out_size, o_it) * 2
        + _padded_tile_bytes(tb, out_size, 4)          # f32 intermediate h1
    )
    vmem_limit = max(32 << 20, min(int(vmem_bytes * 1.5) + (2 << 20), 64 << 20))

    flops = 2 * b_pad * out_size * (in_size + out_size)
    bytes_accessed = (x_in.size * x_it + w1_t.size * w1_it + w2_t.size * w2_it
                      + (b1.size + b2.size) * 4 + b_pad * out_size * o_it)

    out = pl.pallas_call(
        functools.partial(_unfused_kernel, neg_slope=negative_slope),
        out_shape=jax.ShapeDtypeStruct((b_pad, out_size), out_dtype),
        grid=(nb,),
        in_specs=in_specs,
        out_specs=out_spec,
        compiler_params=pltpu.CompilerParams(
            dimension_semantics=("parallel",),
            vmem_limit_bytes=vmem_limit),
        cost_estimate=pl.CostEstimate(
            flops=flops, transcendentals=0, bytes_accessed=bytes_accessed),
    )(x_in, w1_t, b1, w2_t, b2)

    return out if b_pad == B else out[:B]


# ---------------------------------------------------------------------------
# reference / init (mirrors the PyTorch module)
# ---------------------------------------------------------------------------
def init_params(key, in_size, out_size):
    """Deterministic init mirroring nn.Linear's uniform(-1/sqrt(fan_in)) bounds."""
    k1, k2, k3, k4 = jax.random.split(key, 4)
    bound1 = 1.0 / (in_size ** 0.5)
    bound2 = 1.0 / (out_size ** 0.5)
    # Stored already transposed: (in, out) and (out, out).
    w1_t = jax.random.uniform(k1, (in_size, out_size), jnp.float32, -bound1, bound1)
    b1 = jax.random.uniform(k2, (1, out_size), jnp.float32, -bound1, bound1)
    w2_t = jax.random.uniform(k3, (out_size, out_size), jnp.float32, -bound2, bound2)
    b2 = jax.random.uniform(k4, (1, out_size), jnp.float32, -bound2, bound2)
    return w1_t, b1, w2_t, b2


def reference_forward(x, w1_t, b1, w2_t, b2, negative_slope=0.01):
    h1 = x @ w1_t + b1
    h2 = h1 @ w2_t + b2
    return jnp.where(h2 > 0, h2, negative_slope * h2)


if __name__ == "__main__":
    key = jax.random.PRNGKey(0)

    def check(name, got, want, atol, rtol):
        assert got.shape == want.shape, (name, got.shape, want.shape)
        g = got.astype(jnp.float32)
        err = float(jnp.max(jnp.abs(g - want)))
        assert bool(jnp.allclose(g, want, atol=atol, rtol=rtol)), (
            f"{name} mismatch, max|err|={err}")

    configs = [(8, 32, 32), (48, 64, 96)]  # second cfg exercises 2-tile batch grid
    for ci, (B, in_size, out_size) in enumerate(configs):
        kx, kp, key = jax.random.split(key, 3)
        x = jax.random.normal(kx, (B, in_size), jnp.float32)
        w1_t, b1, w2_t, b2 = init_params(kp, in_size, out_size)
        ref = reference_forward(x, w1_t, b1, w2_t, b2)

        # Fused path, f32 MXU weights (tight check of kernel plumbing).
        wf, bf = fuse_base_emb_params(w1_t, b1, w2_t, b2, mxu_dtype=jnp.float32)
        out_f32 = jax.block_until_ready(base_emb_forward_fused(x, wf, bf))
        check(f"fused_f32[{ci}]", out_f32, ref, 5e-3, 5e-3)

        # Fused path, bf16 MXU weights (default / recommended config).
        wbf, bbf = fuse_base_emb_params(w1_t, b1, w2_t, b2)  # bf16 by default
        out_bf16 = jax.block_until_ready(base_emb_forward_fused(x, wbf, bbf))
        check(f"fused_bf16[{ci}]", out_bf16, ref, 5e-2, 5e-2)

        # Unfused two-dot path (weights not cached / B < in_size regime).
        out_unf = jax.block_until_ready(base_emb_forward(x, w1_t, b1, w2_t, b2))
        check(f"unfused[{ci}]", out_unf, ref, 5e-3, 5e-3)

        # bf16 output dtype option (halves the output HBM write).
        out_bf16o = jax.block_until_ready(
            base_emb_forward_fused(x, wf, bf, out_dtype=jnp.bfloat16))
        assert out_bf16o.dtype == jnp.bfloat16
        check(f"fused_bf16out[{ci}]", out_bf16o, ref, 5e-2, 5e-2)

    print("KERNEL_OK")
</pallas_src>

<mosaic_0001>
module attributes {stable_mosaic.version = 11 : i64} {
  func.func @_fused_kernel(%arg0: i32, %arg1: i32, %arg2: i32, %arg3: memref<8x32xf32, #tpu.memory_space<vmem>>, %arg4: memref<32x32xf32, #tpu.memory_space<vmem>>, %arg5: memref<1x32xf32, #tpu.memory_space<vmem>>, %arg6: memref<8x32xf32, #tpu.memory_space<vmem>>) attributes {dimension_semantics = [#tpu.dimension_semantics<parallel>, #tpu.dimension_semantics<parallel>, #tpu.dimension_semantics<arbitrary>], iteration_bounds = array<i64: 1, 1, 1>, scalar_prefetch = 0 : i64, scratch_operands = 0 : i64, tpu.core_type = #tpu.core_type<tc>, window_params = [{transform_indices = @transform_0, window_bounds = array<i64: 8, 32>}, {pipeline_mode = #tpu.pipeline_mode<synchronous>, transform_indices = @transform_1, window_bounds = array<i64: 32, 32>}, {pipeline_mode = #tpu.pipeline_mode<synchronous>, transform_indices = @transform_2, window_bounds = array<i64: 1, 32>}, {transform_indices = @transform_3, window_bounds = array<i64: 8, 32>}]} {
    %c0 = arith.constant 0 : index
    %c0_0 = arith.constant 0 : index
    %0 = vector.load %arg3[%c0, %c0_0] : memref<8x32xf32, #tpu.memory_space<vmem>>, vector<8x32xf32>
    %c0_1 = arith.constant 0 : index
    %c0_2 = arith.constant 0 : index
    %1 = vector.load %arg4[%c0_1, %c0_2] : memref<32x32xf32, #tpu.memory_space<vmem>>, vector<32x32xf32>
    %cst = arith.constant dense<0.000000e+00> : vector<8x32xf32>
    %2 = tpu.matmul %0, %1, %cst {dimension_numbers = #tpu.dot_dimension_numbers<[1], [0], [0], [1], [0, 0, 1, 1], [], []>} : vector<8x32xf32>, vector<32x32xf32>, vector<8x32xf32> -> vector<8x32xf32>
    %c0_3 = arith.constant 0 : index
    %c0_4 = arith.constant 0 : index
    %3 = vector.load %arg5[%c0_3, %c0_4] : memref<1x32xf32, #tpu.memory_space<vmem>>, vector<1x32xf32>
    %4 = vector.broadcast %3 : vector<1x32xf32> to vector<8x32xf32>
    %5 = arith.addf %2, %4 : vector<8x32xf32>
    %cst_5 = arith.constant 0.00999999977 : f32
    %6 = vector.broadcast %cst_5 : f32 to vector<8x32xf32>
    %7 = arith.mulf %6, %5 : vector<8x32xf32>
    %8 = arith.maximumf %5, %7 : vector<8x32xf32>
    %c0_6 = arith.constant 0 : index
    %c0_7 = arith.constant 0 : index
    %9 = vector.load %arg6[%c0_6, %c0_7] : memref<8x32xf32, #tpu.memory_space<vmem>>, vector<8x32xf32>
    tpu.vector_store %arg6[%c0_6, %c0_7], %8 {strides = array<i32>} : memref<8x32xf32, #tpu.memory_space<vmem>>, vector<8x32xf32>,
    return
  }
  func.func @transform_0(%arg0: i32, %arg1: i32, %arg2: i32) -> (i32, i32) {
    %c0_i32 = arith.constant 0 : i32
    return %arg0, %arg2 : i32, i32
  }
  func.func @transform_1(%arg0: i32, %arg1: i32, %arg2: i32) -> (i32, i32) {
    %c0_i32 = arith.constant 0 : i32
    return %arg2, %arg1 : i32, i32
  }
  func.func @transform_2(%arg0: i32, %arg1: i32, %arg2: i32) -> (i32, i32) {
    %c0_i32 = arith.constant 0 : i32
    %c0_i32_0 = arith.constant 0 : i32
    return %c0_i32, %arg1 : i32, i32
  }
  func.func @transform_3(%arg0: i32, %arg1: i32, %arg2: i32) -> (i32, i32) {
    %c0_i32 = arith.constant 0 : i32
    return %arg0, %arg1 : i32, i32
  }
}

</mosaic_0001>

<llo_original>
// kernel: tpu_custom_call.1
$region0: #{tpu_custom_call.1}
  #allocation0 [shape = 'u32[]', space=smem, size = 0x4, offset = 0x4, fixed_abs, tag = 'smem constant byte address 0x4 - core index']
  #allocation1 [shape = 'u32[144,128]{1,0:T(1,128)}', space=vmem, size = 0x12000, scoped, tag = 'internal scratch']
  %s0 = inlined_call_operand.hbm [shape: f32[8,32], index: 0, kind: input, shape index: {}]
  %s1 = inlined_call_operand.hbm [shape: f32[32,32], index: 1, kind: input, shape index: {}]
  %s2 = inlined_call_operand.vmem [shape: f32[1,32], index: 2, kind: input, shape index: {}]
  %s3 = inlined_call_operand.hbm [shape: f32[8,32], index: 3, kind: output, shape index: {}]
  %s4 = sld [smem:[#allocation0]]
  $region30: #{tpu_custom_call.1} parent=0
    _
  %s6 = ssub.s32 1, %s4
  %s7 = scalar_select 0, %s6, %s4
  $region1: #{tpu_custom_call.1} parent=0
    #allocation2 [shape = 'u8[4096]{0}', space=vmem, size = 0x1000, scoped, tag = 'input window, operand 0, single buffered']
    #allocation3 [shape = 's32[1]{0}', space=sflag, size = 0x4, scoped, tag = 'scoped memory for tpu_custom_call.1']
    #allocation4 [shape = 's32[1]{0}', space=sflag, size = 0x4, scoped, tag = 'scoped memory for tpu_custom_call.1']
    #allocation5 [shape = 'u8[16384]{0}', space=vmem, size = 0x4000, scoped, tag = 'input window, operand 1, single buffered']
    #allocation6 [shape = 's32[1]{0}', space=sflag, size = 0x4, scoped, tag = 'scoped memory for tpu_custom_call.1']
    #allocation7 [shape = 'u8[4096]{0}', space=vmem, size = 0x1000, scoped, tag = 'output window, operand 0, single buffered']
    %8 = vsyncpa [#allocation3], 0
    %9 = vsyncpa [#allocation6], 0
    %10 = vsyncpa [#allocation4], 0
    // Predicated region
    $region2: #{tpu_custom_call.1} parent=1 // pred_check
      _
    $region3: #{tpu_custom_call.1} parent=1 // pred_check_branch
      %12 = sbr.rel (0) target = $region5
    $region4: #{tpu_custom_call.1} parent=1 // pred_region
      %s14 = ssub.s32 128, 128
      %15 = vsyncadd [#allocation3], %s14
      %s17 = sshll.u32 [#allocation2], 4
      %s18 = int_to_ptr.vmem [resolvable:$true] %s17
      %20 = dma.hbm_to_vmem [thread:$0]  %s0, 128, %s18, [#allocation3]
    $region5: #{tpu_custom_call.1} parent=1 // pred_fallthru
      _
    // Predicated region
    $region6: #{tpu_custom_call.1} parent=1 // pred_check
      _
    $region7: #{tpu_custom_call.1} parent=1 // pred_check_branch
      %22 = sbr.rel (0) target = $region9
    $region8: #{tpu_custom_call.1} parent=1 // pred_region
      %s24 = ssub.s32 512, 512
      %25 = vsyncadd [#allocation6], %s24
      %s26 = sshll.u32 [#allocation5], 4
      %s27 = int_to_ptr.vmem [resolvable:$true] %s26
      %32 = dma.hbm_to_vmem [thread:$0]  %s1, 512, %s27, [#allocation6], 128, 128, 8
    $region9: #{tpu_custom_call.1} parent=1 // pred_fallthru
      _
    // Predicated region
    $region10: #{tpu_custom_call.1} parent=1 // pred_check
      _
    $region11: #{tpu_custom_call.1} parent=1 // pred_check_branch
      %34 = sbr.rel (0) target = $region13
    $region12: #{tpu_custom_call.1} parent=1 // pred_region
      _
    $region13: #{tpu_custom_call.1} parent=1 // pred_fallthru
      _
    // Predicated region
    $region14: #{tpu_custom_call.1} parent=1 // pred_check
      _
    $region15: #{tpu_custom_call.1} parent=1 // pred_check_branch
      %36 = sbr.rel (0) target = $region17
    $region16: #{tpu_custom_call.1} parent=1 // pred_region
      %37 = dma.done [#allocation3], 128
    $region17: #{tpu_custom_call.1} parent=1 // pred_fallthru
      _
    // Predicated region
    $region18: #{tpu_custom_call.1} parent=1 // pred_check
      _
    $region19: #{tpu_custom_call.1} parent=1 // pred_check_branch
      %39 = sbr.rel (0) target = $region21
    $region20: #{tpu_custom_call.1} parent=1 // pred_region
      %40 = dma.done [#allocation6], 512
    $region21: #{tpu_custom_call.1} parent=1 // pred_fallthru
      _
    %v41 = vld [vmem:[#allocation2] sm:$0xff]
    %v42 = vld [vmem:[#allocation5] sm:$0xff]
    %v43 = vld [vmem:[#allocation5 + $0x8] sm:$0xff]
    %v44 = vld [vmem:[#allocation5 + $0x10] sm:$0xff]
    %v45 = vld [vmem:[#allocation5 + $0x18] sm:$0xff]
    %v46 = vld [vmem:[%s2] sm:$0x1]
    %v48 = vlaneseq
    %v49 = vshrl.u32 %v48, 7
    %v50 = vsub.s32 0, %v49
    %v51 = vrot.slane %v46, %v50
    %vm53 = vcmask 261120
    %v55 = vsel %vm53, %v41, 0
    %57 = vmatprep.subr.mxu0 0.0
    %58 = vmatpush1.msra.mxu0 0.0
    %59 = vmatprep.subr.mxu0 0.0
    %60 = vmatpush1.msra.mxu0 0.0
    %61 = vmatprep.subr.mxu0 0.0
    %62 = vmatpush1.msra.mxu0 0.0
    %63 = vmatprep.subr.mxu0 0.0
    %64 = vmatpush1.msra.mxu0 0.0
    %65 = vmatprep.subr.mxu0 0.0
    %66 = vmatpush1.msra.mxu0 0.0
    %67 = vmatprep.subr.mxu0 0.0
    %68 = vmatpush1.msra.mxu0 0.0
    %69 = vmatprep.subr.mxu0 0.0
    %70 = vmatpush1.msra.mxu0 0.0
    %71 = vmatprep.subr.mxu0 0.0
    %72 = vmatpush1.msra.mxu0 0.0
    %73 = vmatprep.subr.mxu0 0.0
    %74 = vmatpush1.msra.mxu0 0.0
    %75 = vmatprep.subr.mxu0 0.0
    %76 = vmatpush1.msra.mxu0 0.0
    %77 = vmatprep.subr.mxu0 0.0
    %78 = vmatpush1.msra.mxu0 0.0
    %79 = vmatprep.subr.mxu0 0.0
    %80 = vmatpush1.msra.mxu0 0.0
    %81 = vmatprep.subr.mxu0 0.0
    %82 = vmatpush1.msra.mxu0 %v45
    %83 = vmatprep.subr.mxu0 0.0
    %84 = vmatpush1.msra.mxu0 %v44
    %85 = vmatprep.subr.mxu0 0.0
    %86 = vmatpush1.msra.mxu0 %v43
    %87 = vmatprep.subr.mxu0 0.0
    %88 = vmatpush1.msra.mxu0 %v42
    %89 = vmatprep.subr.mxu0 0.0
    %90 = vmatpush2.msra.mxu0 0.0
    %91 = vmatprep.subr.mxu0 0.0
    %92 = vmatpush2.msra.mxu0 0.0
    %93 = vmatprep.subr.mxu0 0.0
    %94 = vmatpush2.msra.mxu0 0.0
    %95 = vmatprep.subr.mxu0 0.0
    %96 = vmatpush2.msra.mxu0 0.0
    %97 = vmatprep.subr.mxu0 0.0
    %98 = vmatpush2.msra.mxu0 0.0
    %99 = vmatprep.subr.mxu0 0.0
    %100 = vmatpush2.msra.mxu0 0.0
    %101 = vmatprep.subr.mxu0 0.0
    %102 = vmatpush2.msra.mxu0 0.0
    %103 = vmatprep.subr.mxu0 0.0
    %104 = vmatpush2.msra.mxu0 0.0
    %105 = vmatprep.subr.mxu0 0.0
    %106 = vmatpush2.msra.mxu0 0.0
    %107 = vmatprep.subr.mxu0 0.0
    %108 = vmatpush2.msra.mxu0 0.0
    %109 = vmatprep.subr.mxu0 0.0
    %110 = vmatpush2.msra.mxu0 0.0
    %111 = vmatprep.subr.mxu0 0.0
    %112 = vmatpush2.msra.mxu0 0.0
    %113 = vmatprep.subr.mxu0 0.0
    %114 = vmatpush2.msra.mxu0 0.0
    %115 = vmatprep.subr.mxu0 0.0
    %116 = vmatpush2.msra.mxu0 0.0
    %117 = vmatprep.subr.mxu0 0.0
    %118 = vmatpush2.msra.mxu0 0.0
    %119 = vmatprep.subr.mxu0 0.0
    %120 = vmatpush2.msra.mxu0 0.0
    %121 = vmatprep.mubr.f32.mxu0 0.0
    %122 = vmatmul.mubr.f32.gmra.mxu0 %v55
    %v123 = vpop.f32.mrf.mxu0
    %v124 = vadd.f32 %v51, %v123
    %v125 = vpop.f32.mrf.mxu0
    %126 = vdwg.mxu0
    %v127 = vmul.f32 %v124, 0.01
    %v128 = vmax.f32 %v124, %v127
    %129 = vst.msk [vmem:[#allocation7] sm:$0xff] %vm53, %v128
    // Predicated region
    $region22: #{tpu_custom_call.1} parent=1 // pred_check
      _
    $region23: #{tpu_custom_call.1} parent=1 // pred_check_branch
      %131 = sbr.rel (0) target = $region25
    $region24: #{tpu_custom_call.1} parent=1 // pred_region
      %s133 = ssub.s32 128, 128
      %134 = vsyncadd [#allocation4], %s133
      %s136 = sshll.u32 [#allocation7], 4
      %s137 = int_to_ptr.vmem [resolvable:$true] %s136
      %139 = dma.vmem_to_hbm [thread:$0]  %s137, 128, %s3, [#allocation4]
    $region25: #{tpu_custom_call.1} parent=1 // pred_fallthru
      _
    // Predicated region
    $region26: #{tpu_custom_call.1} parent=1 // pred_check
      _
    $region27: #{tpu_custom_call.1} parent=1 // pred_check_branch
      %141 = sbr.rel (0) target = $region29
    $region28: #{tpu_custom_call.1} parent=1 // pred_region
      %142 = dma.done [#allocation4], 128
    $region29: #{tpu_custom_call.1} parent=1 // pred_fallthru
      _
    %143 = vsyncpa [#allocation3], 1
    %144 = vsyncpa [#allocation6], 1
    %145 = vsyncpa [#allocation4], 1

</llo_original>
